<compile_context>
chip_gen: v5e
topology: v5e:2x2
jax: 0.10.0
libtpu: 0.0.40
codegen_flags: <defaults>
</compile_context>

<pallas_src>
import functools

import jax
import jax.numpy as jnp
from jax.experimental import pallas as pl
from jax.experimental.pallas import tpu as pltpu


def _round_up(x, m):
    return (x + m - 1) // m * m


def _cdiv(a, b):
    return (a + b - 1) // b


def _vmem_capacity_bytes():
    """Best-effort per-core VMEM capacity; conservative (v7x) fallback."""
    try:
        cap = getattr(pltpu.get_tpu_info(), "vmem_capacity_bytes", None)
        if cap:
            return int(cap)
    except Exception:
        pass
    return 64 << 20


def _visual_emb_kernel(x_ref, pos_ref, ids_ref, wi_ref, wp_ref, emb_ref,
                       vecs_ref, o_ref, *, eps, h_real, n_types, compute_dtype):
    """Fused img_linear + pos_linear + token-type embedding + LayerNorm.

    x_ref   : (tile_m, vis_dim)  input dtype   region features
    pos_ref : (tile_m, loc_dim)  input dtype   7-dim box features
    ids_ref : (tile_m, 1)        int32         token-type ids
    wi_ref  : (vis_dim, H_pad)   compute dtype img_linear weight
    wp_ref  : (loc_dim, H_pad)   f32           pos_linear weight
    emb_ref : (n_types, H_pad)   f32           token-type embedding table
    vecs_ref: (3, H_pad)         f32           [img_b + pos_b ; gamma ; beta]
    o_ref   : (tile_m, H_pad)
    """
    # --- big projection on the MXU (f32 accumulation) -----------------------
    h = jnp.dot(x_ref[...].astype(compute_dtype), wi_ref[...],
                preferred_element_type=jnp.float32)

    # --- pos_linear as loc_dim rank-1 broadcast-FMAs on the VPU --------------
    pos = pos_ref[...].astype(jnp.float32)          # (tile_m, loc_dim)
    wp = wp_ref[...].astype(jnp.float32)            # (loc_dim, H_pad)
    for d in range(pos.shape[-1]):
        h = h + pos[:, d:d + 1] * wp[d:d + 1, :]

    # --- token-type embedding lookup via selects over the tiny vocab ---------
    ids = ids_ref[...]                               # (tile_m, 1) int32
    emb = emb_ref[...].astype(jnp.float32)           # (n_types, H_pad)
    tok = jnp.where(ids == 0, emb[0:1, :], 0.0)
    for v in range(1, n_types):
        tok = jnp.where(ids == v, emb[v:v + 1, :], tok)

    h = h + tok + vecs_ref[0:1, :]                   # fused bias (img_b + pos_b)

    # --- LayerNorm in f32, statistics masked to the real hidden width --------
    h_pad = h.shape[-1]
    inv_h = 1.0 / float(h_real)
    if h_pad != h_real:
        mask = jax.lax.broadcasted_iota(jnp.int32, (1, h_pad), 1) < h_real
        h = jnp.where(mask, h, 0.0)
        mean = jnp.sum(h, axis=-1, keepdims=True) * inv_h
        centered = jnp.where(mask, h - mean, 0.0)
    else:
        mean = jnp.mean(h, axis=-1, keepdims=True)
        centered = h - mean
    var = jnp.sum(centered * centered, axis=-1, keepdims=True) * inv_h
    norm = centered * jax.lax.rsqrt(var + eps)
    o_ref[...] = (norm * vecs_ref[1:2, :] + vecs_ref[2:3, :]).astype(o_ref.dtype)


def visual_embeddings(visual_input_features,
                      visual_position_features,
                      vis_token_type_ids,
                      params,
                      *,
                      eps=1e-12,
                      tile_m=512,
                      compute_dtype=jnp.bfloat16,
                      out_dtype=None):
    """Pallas implementation of VisualEmbeddings.forward (eval-mode dropout)."""
    B, S, vis_dim = visual_input_features.shape
    loc_dim = visual_position_features.shape[-1]
    tok_emb = params["tok_emb"]
    V, H = tok_emb.shape
    M = B * S
    if out_dtype is None:
        out_dtype = visual_input_features.dtype

    H_pad = _round_up(H, 128)                        # lane-dense output

    # ---- operands: no M padding, no fused-input materialisation -------------
    x = visual_input_features.reshape(M, vis_dim)
    pos = visual_position_features.reshape(M, loc_dim)
    ids = vis_token_type_ids.reshape(M, 1).astype(jnp.int32)

    pad_h = ((0, 0), (0, H_pad - H))
    wi = jnp.pad(params["img_w"], pad_h).astype(compute_dtype)   # (vis_dim, H_pad)
    wp = jnp.pad(params["pos_w"], pad_h).astype(jnp.float32)     # (loc_dim, H_pad)
    emb = jnp.pad(tok_emb, pad_h).astype(jnp.float32)            # (V, H_pad)
    vecs = jnp.stack([params["img_b"] + params["pos_b"],
                      params["ln_gamma"],
                      params["ln_beta"]]).astype(jnp.float32)
    vecs = jnp.pad(vecs, pad_h)                                  # (3, H_pad)

    # ---- tiling --------------------------------------------------------------
    tile_m = max(16, _round_up(int(tile_m), 16))
    tile_m = min(tile_m, _round_up(M, 16))
    if _cdiv(M, tile_m) < 2 and M > 16:
        # v7x shards the "parallel" axis across its 2 TensorCores.
        tile_m = _round_up(_cdiv(M, 2), 16)

    in_bytes = jnp.dtype(visual_input_features.dtype).itemsize
    out_bytes = jnp.dtype(out_dtype).itemsize
    w_bytes = jnp.dtype(compute_dtype).itemsize

    def vmem_need(tm):
        lane = lambda n: _round_up(max(int(n), 1), 128)
        sub = lambda n: _round_up(max(int(n), 1), 8)
        return (2 * tm * lane(vis_dim) * in_bytes        # x tile (double buffered)
                + 2 * tm * lane(loc_dim) * in_bytes      # pos tile
                + 2 * tm * lane(1) * 4                   # ids tile
                + 2 * tm * H_pad * out_bytes             # output tile
                + 2 * sub(vis_dim) * H_pad * w_bytes     # Wi (conservative x2)
                + 2 * sub(loc_dim) * H_pad * 4           # Wp
                + 2 * sub(V) * H_pad * 4                 # tok_emb
                + 2 * sub(3) * H_pad * 4)                # bias/gamma/beta

    vmem_cap = _vmem_capacity_bytes()
    budget = max(vmem_cap - (12 << 20), 16 << 20)        # leave compiler headroom
    while tile_m > 16 and vmem_need(tile_m) > budget:
        tile_m = max(16, _round_up(tile_m // 2, 16))
    grid = (_cdiv(M, tile_m),)
    vmem_limit = int(min(max(vmem_need(tile_m) + (4 << 20), 32 << 20), budget))

    cost = pl.CostEstimate(
        flops=int(2 * M * (vis_dim + loc_dim + 1) * H_pad + 8 * M * H_pad),
        transcendentals=int(M),
        bytes_accessed=int(M * (vis_dim + loc_dim + 1) * in_bytes
                           + vis_dim * H_pad * w_bytes
                           + (loc_dim + V + 3) * H_pad * 4
                           + M * H_pad * out_bytes),
    )

    kernel = functools.partial(_visual_emb_kernel, eps=float(eps), h_real=H,
                               n_types=V, compute_dtype=compute_dtype)

    def build(single_buffer_invariants):
        inv_kwargs = ({"pipeline_mode": pl.Buffered(1)}
                      if single_buffer_invariants else {})

        def inv_spec(shape):
            return pl.BlockSpec(shape, lambda i: (0, 0), **inv_kwargs)

        return pl.pallas_call(
            kernel,
            out_shape=jax.ShapeDtypeStruct((M, H_pad), out_dtype),
            grid=grid,
            in_specs=[
                pl.BlockSpec((tile_m, vis_dim), lambda i: (i, 0)),   # x
                pl.BlockSpec((tile_m, loc_dim), lambda i: (i, 0)),   # pos
                pl.BlockSpec((tile_m, 1), lambda i: (i, 0)),         # ids
                inv_spec((vis_dim, H_pad)),                          # Wi
                inv_spec((loc_dim, H_pad)),                          # Wp
                inv_spec((V, H_pad)),                                # tok_emb
                inv_spec((3, H_pad)),                                # bias/gamma/beta
            ],
            out_specs=pl.BlockSpec((tile_m, H_pad), lambda i: (i, 0)),
            compiler_params=pltpu.CompilerParams(
                dimension_semantics=("parallel",),
                vmem_limit_bytes=vmem_limit),
            cost_estimate=cost,
        )

    args = (x, pos, ids, wi, wp, emb, vecs)
    try:
        out = build(True)(*args)
    except Exception:
        # Fallback for jax versions without single-buffered pipeline_mode.
        out = build(False)(*args)

    out = out.reshape(B, S, H_pad)
    if H_pad != H:
        out = out[..., :H]
    return out


def visual_embeddings_ref(visual_input_features, visual_position_features,
                          vis_token_type_ids, params, *, eps=1e-12,
                          compute_dtype=jnp.bfloat16):
    """Pure-JAX reference with the same MXU-operand quantization as the kernel."""
    q = lambda a: a.astype(compute_dtype).astype(jnp.float32)
    img = jnp.matmul(q(visual_input_features), q(params["img_w"]))
    posm = jnp.matmul(visual_position_features.astype(jnp.float32),
                      params["pos_w"].astype(jnp.float32))
    tok = jnp.take(params["tok_emb"].astype(jnp.float32),
                   vis_token_type_ids, axis=0)
    h = img + posm + tok + params["img_b"] + params["pos_b"]
    mean = jnp.mean(h, axis=-1, keepdims=True)
    var = jnp.mean((h - mean) ** 2, axis=-1, keepdims=True)
    norm = (h - mean) * jax.lax.rsqrt(var + eps)
    return norm * params["ln_gamma"] + params["ln_beta"]


def init_params(key, vis_dim, loc_dim, hidden, type_vocab_size=2):
    ks = jax.random.split(key, 5)
    return {
        "img_w": jax.random.normal(ks[0], (vis_dim, hidden), jnp.float32) * 0.02,
        "img_b": jnp.zeros((hidden,), jnp.float32),
        "pos_w": jax.random.normal(ks[1], (loc_dim, hidden), jnp.float32) * 0.02,
        "pos_b": jnp.zeros((hidden,), jnp.float32),
        "tok_emb": jax.random.normal(ks[2], (type_vocab_size, hidden),
                                     jnp.float32) * 0.02,
        "ln_gamma": jnp.ones((hidden,), jnp.float32),
        "ln_beta": jnp.zeros((hidden,), jnp.float32),
    }


if __name__ == "__main__":
    B, S = 2, 8          # batch, number of visual regions
    vis_dim = 32         # region feature dim (small for demo)
    loc_dim = 7          # [x1, y1, x2, y2, w, h, w*h]
    hidden = 32          # config.hidden_size (small for demo)

    key = jax.random.PRNGKey(0)
    k1, k2, kp = jax.random.split(key, 3)
    visual_input_features = jax.random.normal(k1, (B, S, vis_dim), jnp.float32)
    visual_position_features = jax.random.uniform(k2, (B, S, loc_dim), jnp.float32)
    vis_token_type_ids = jnp.ones((B, S), jnp.int32)     # visual segment id = 1

    params = init_params(kp, vis_dim, loc_dim, hidden)

    out = visual_embeddings(visual_input_features,
                            visual_position_features,
                            vis_token_type_ids,
                            params)
    out = jax.block_until_ready(out)
    assert out.shape == (B, S, hidden)

    ref = visual_embeddings_ref(visual_input_features,
                                visual_position_features,
                                vis_token_type_ids,
                                params)
    max_err = float(jnp.max(jnp.abs(out.astype(jnp.float32) - ref)))
    assert max_err < 2e-2, f"max abs error {max_err}"

    print("KERNEL_OK")
</pallas_src>

<mosaic_0001>
module attributes {stable_mosaic.version = 11 : i64} {
  func.func @_visual_emb_kernel(%arg0: i32, %arg1: memref<16x32xf32, #tpu.memory_space<vmem>>, %arg2: memref<16x7xf32, #tpu.memory_space<vmem>>, %arg3: memref<16x1xi32, #tpu.memory_space<vmem>>, %arg4: memref<32x128xbf16, #tpu.memory_space<vmem>>, %arg5: memref<7x128xf32, #tpu.memory_space<vmem>>, %arg6: memref<2x128xf32, #tpu.memory_space<vmem>>, %arg7: memref<3x128xf32, #tpu.memory_space<vmem>>, %arg8: memref<16x128xf32, #tpu.memory_space<vmem>>) attributes {dimension_semantics = [#tpu.dimension_semantics<parallel>], iteration_bounds = array<i64: 1>, scalar_prefetch = 0 : i64, scratch_operands = 0 : i64, tpu.core_type = #tpu.core_type<tc>, window_params = [{transform_indices = @transform_0, window_bounds = array<i64: 16, 32>}, {transform_indices = @transform_1, window_bounds = array<i64: 16, 7>}, {transform_indices = @transform_2, window_bounds = array<i64: 16, 1>}, {pipeline_mode = #tpu.pipeline_mode<synchronous>, transform_indices = @transform_3, window_bounds = array<i64: 32, 128>}, {pipeline_mode = #tpu.pipeline_mode<synchronous>, transform_indices = @transform_4, window_bounds = array<i64: 7, 128>}, {pipeline_mode = #tpu.pipeline_mode<synchronous>, transform_indices = @transform_5, window_bounds = array<i64: 2, 128>}, {pipeline_mode = #tpu.pipeline_mode<synchronous>, transform_indices = @transform_6, window_bounds = array<i64: 3, 128>}, {transform_indices = @transform_7, window_bounds = array<i64: 16, 128>}]} {
    %c0 = arith.constant 0 : index
    %c0_0 = arith.constant 0 : index
    %0 = vector.load %arg1[%c0, %c0_0] : memref<16x32xf32, #tpu.memory_space<vmem>>, vector<16x32xf32>
    %1 = arith.truncf %0 : vector<16x32xf32> to vector<16x32xbf16>
    %c0_1 = arith.constant 0 : index
    %c0_2 = arith.constant 0 : index
    %2 = vector.load %arg4[%c0_1, %c0_2] : memref<32x128xbf16, #tpu.memory_space<vmem>>, vector<32x128xbf16>
    %cst = arith.constant dense<0.000000e+00> : vector<16x128xf32>
    %3 = tpu.matmul %1, %2, %cst {dimension_numbers = #tpu.dot_dimension_numbers<[1], [0], [0], [1], [0, 0, 1, 1], [], []>} : vector<16x32xbf16>, vector<32x128xbf16>, vector<16x128xf32> -> vector<16x128xf32>
    %c0_3 = arith.constant 0 : index
    %c0_4 = arith.constant 0 : index
    %4 = vector.load %arg2[%c0_3, %c0_4] : memref<16x7xf32, #tpu.memory_space<vmem>>, vector<16x7xf32>
    %c0_5 = arith.constant 0 : index
    %c0_6 = arith.constant 0 : index
    %5 = vector.load %arg5[%c0_5, %c0_6] : memref<7x128xf32, #tpu.memory_space<vmem>>, vector<7x128xf32>
    %6 = vector.extract_strided_slice %4 {offsets = [0, 0], sizes = [16, 1], strides = [1, 1]} : vector<16x7xf32> to vector<16x1xf32>
    %7 = vector.extract_strided_slice %5 {offsets = [0, 0], sizes = [1, 128], strides = [1, 1]} : vector<7x128xf32> to vector<1x128xf32>
    %8 = vector.broadcast %6 : vector<16x1xf32> to vector<16x128xf32>
    %9 = vector.broadcast %7 : vector<1x128xf32> to vector<16x128xf32>
    %10 = arith.mulf %8, %9 : vector<16x128xf32>
    %11 = arith.addf %3, %10 : vector<16x128xf32>
    %12 = vector.extract_strided_slice %4 {offsets = [0, 1], sizes = [16, 1], strides = [1, 1]} : vector<16x7xf32> to vector<16x1xf32>
    %13 = vector.extract_strided_slice %5 {offsets = [1, 0], sizes = [1, 128], strides = [1, 1]} : vector<7x128xf32> to vector<1x128xf32>
    %14 = vector.broadcast %12 : vector<16x1xf32> to vector<16x128xf32>
    %15 = vector.broadcast %13 : vector<1x128xf32> to vector<16x128xf32>
    %16 = arith.mulf %14, %15 : vector<16x128xf32>
    %17 = arith.addf %11, %16 : vector<16x128xf32>
    %18 = vector.extract_strided_slice %4 {offsets = [0, 2], sizes = [16, 1], strides = [1, 1]} : vector<16x7xf32> to vector<16x1xf32>
    %19 = vector.extract_strided_slice %5 {offsets = [2, 0], sizes = [1, 128], strides = [1, 1]} : vector<7x128xf32> to vector<1x128xf32>
    %20 = vector.broadcast %18 : vector<16x1xf32> to vector<16x128xf32>
    %21 = vector.broadcast %19 : vector<1x128xf32> to vector<16x128xf32>
    %22 = arith.mulf %20, %21 : vector<16x128xf32>
    %23 = arith.addf %17, %22 : vector<16x128xf32>
    %24 = vector.extract_strided_slice %4 {offsets = [0, 3], sizes = [16, 1], strides = [1, 1]} : vector<16x7xf32> to vector<16x1xf32>
    %25 = vector.extract_strided_slice %5 {offsets = [3, 0], sizes = [1, 128], strides = [1, 1]} : vector<7x128xf32> to vector<1x128xf32>
    %26 = vector.broadcast %24 : vector<16x1xf32> to vector<16x128xf32>
    %27 = vector.broadcast %25 : vector<1x128xf32> to vector<16x128xf32>
    %28 = arith.mulf %26, %27 : vector<16x128xf32>
    %29 = arith.addf %23, %28 : vector<16x128xf32>
    %30 = vector.extract_strided_slice %4 {offsets = [0, 4], sizes = [16, 1], strides = [1, 1]} : vector<16x7xf32> to vector<16x1xf32>
    %31 = vector.extract_strided_slice %5 {offsets = [4, 0], sizes = [1, 128], strides = [1, 1]} : vector<7x128xf32> to vector<1x128xf32>
    %32 = vector.broadcast %30 : vector<16x1xf32> to vector<16x128xf32>
    %33 = vector.broadcast %31 : vector<1x128xf32> to vector<16x128xf32>
    %34 = arith.mulf %32, %33 : vector<16x128xf32>
    %35 = arith.addf %29, %34 : vector<16x128xf32>
    %36 = vector.extract_strided_slice %4 {offsets = [0, 5], sizes = [16, 1], strides = [1, 1]} : vector<16x7xf32> to vector<16x1xf32>
    %37 = vector.extract_strided_slice %5 {offsets = [5, 0], sizes = [1, 128], strides = [1, 1]} : vector<7x128xf32> to vector<1x128xf32>
    %38 = vector.broadcast %36 : vector<16x1xf32> to vector<16x128xf32>
    %39 = vector.broadcast %37 : vector<1x128xf32> to vector<16x128xf32>
    %40 = arith.mulf %38, %39 : vector<16x128xf32>
    %41 = arith.addf %35, %40 : vector<16x128xf32>
    %42 = vector.extract_strided_slice %4 {offsets = [0, 6], sizes = [16, 1], strides = [1, 1]} : vector<16x7xf32> to vector<16x1xf32>
    %43 = vector.extract_strided_slice %5 {offsets = [6, 0], sizes = [1, 128], strides = [1, 1]} : vector<7x128xf32> to vector<1x128xf32>
    %44 = vector.broadcast %42 : vector<16x1xf32> to vector<16x128xf32>
    %45 = vector.broadcast %43 : vector<1x128xf32> to vector<16x128xf32>
    %46 = arith.mulf %44, %45 : vector<16x128xf32>
    %47 = arith.addf %41, %46 : vector<16x128xf32>
    %c0_7 = arith.constant 0 : index
    %c0_8 = arith.constant 0 : index
    %48 = vector.load %arg3[%c0_7, %c0_8] : memref<16x1xi32, #tpu.memory_space<vmem>>, vector<16x1xi32>
    %c0_9 = arith.constant 0 : index
    %c0_10 = arith.constant 0 : index
    %49 = vector.load %arg6[%c0_9, %c0_10] : memref<2x128xf32, #tpu.memory_space<vmem>>, vector<2x128xf32>
    %c0_i32 = arith.constant 0 : i32
    %50 = vector.broadcast %c0_i32 : i32 to vector<16x1xi32>
    %51 = arith.cmpi eq, %48, %50 : vector<16x1xi32>
    %52 = vector.extract_strided_slice %49 {offsets = [0, 0], sizes = [1, 128], strides = [1, 1]} : vector<2x128xf32> to vector<1x128xf32>
    %cst_11 = arith.constant 0.000000e+00 : f32
    %53 = vector.shape_cast %51 : vector<16x1xi1> to vector<16x1xi1>
    %54 = vector.broadcast %53 : vector<16x1xi1> to vector<16x128xi1>
    %55 = vector.shape_cast %52 : vector<1x128xf32> to vector<1x128xf32>
    %56 = vector.broadcast %55 : vector<1x128xf32> to vector<16x128xf32>
    %57 = vector.broadcast %cst_11 : f32 to vector<16x128xf32>
    %58 = arith.select %54, %56, %57 : vector<16x128xi1>, vector<16x128xf32>
    %c1_i32 = arith.constant 1 : i32
    %59 = vector.broadcast %c1_i32 : i32 to vector<16x1xi32>
    %60 = arith.cmpi eq, %48, %59 : vector<16x1xi32>
    %61 = vector.extract_strided_slice %49 {offsets = [1, 0], sizes = [1, 128], strides = [1, 1]} : vector<2x128xf32> to vector<1x128xf32>
    %62 = vector.shape_cast %60 : vector<16x1xi1> to vector<16x1xi1>
    %63 = vector.broadcast %62 : vector<16x1xi1> to vector<16x128xi1>
    %64 = vector.shape_cast %61 : vector<1x128xf32> to vector<1x128xf32>
    %65 = vector.broadcast %64 : vector<1x128xf32> to vector<16x128xf32>
    %66 = arith.select %63, %65, %58 : vector<16x128xi1>, vector<16x128xf32>
    %67 = arith.addf %47, %66 : vector<16x128xf32>
    %c0_12 = arith.constant 0 : index
    %c0_13 = arith.constant 0 : index
    %68 = vector.load %arg7[%c0_12, %c0_13] : memref<3x128xf32, #tpu.memory_space<vmem>>, vector<1x128xf32>
    %69 = vector.broadcast %68 : vector<1x128xf32> to vector<16x128xf32>
    %70 = arith.addf %67, %69 : vector<16x128xf32>
    %71 = tpu.iota {dimensions = array<i32: 1>} : vector<1x128xi32>
    %c32_i32 = arith.constant 32 : i32
    %72 = vector.broadcast %c32_i32 : i32 to vector<1x128xi32>
    %73 = arith.cmpi slt, %71, %72 : vector<1x128xi32>
    %cst_14 = arith.constant 0.000000e+00 : f32
    %74 = vector.shape_cast %73 : vector<1x128xi1> to vector<1x128xi1>
    %75 = vector.broadcast %74 : vector<1x128xi1> to vector<16x128xi1>
    %76 = vector.broadcast %cst_14 : f32 to vector<16x128xf32>
    %77 = arith.select %75, %70, %76 : vector<16x128xi1>, vector<16x128xf32>
    %cst_15 = arith.constant dense<0.000000e+00> : vector<16xf32>
    %78 = vector.multi_reduction <add>, %77, %cst_15 [1] : vector<16x128xf32> to vector<16xf32>
    %79 = vector.shape_cast %78 : vector<16xf32> to vector<16x1xf32>
    %cst_16 = arith.constant 3.125000e-02 : f32
    %80 = vector.broadcast %cst_16 : f32 to vector<16x1xf32>
    %81 = arith.mulf %79, %80 : vector<16x1xf32>
    %82 = vector.broadcast %81 : vector<16x1xf32> to vector<16x128xf32>
    %83 = arith.subf %77, %82 : vector<16x128xf32>
    %cst_17 = arith.constant 0.000000e+00 : f32
    %84 = vector.shape_cast %73 : vector<1x128xi1> to vector<1x128xi1>
    %85 = vector.broadcast %84 : vector<1x128xi1> to vector<16x128xi1>
    %86 = vector.broadcast %cst_17 : f32 to vector<16x128xf32>
    %87 = arith.select %85, %83, %86 : vector<16x128xi1>, vector<16x128xf32>
    %88 = arith.mulf %87, %87 : vector<16x128xf32>
    %cst_18 = arith.constant dense<0.000000e+00> : vector<16xf32>
    %89 = vector.multi_reduction <add>, %88, %cst_18 [1] : vector<16x128xf32> to vector<16xf32>
    %90 = vector.shape_cast %89 : vector<16xf32> to vector<16x1xf32>
    %cst_19 = arith.constant 3.125000e-02 : f32
    %91 = vector.broadcast %cst_19 : f32 to vector<16x1xf32>
    %92 = arith.mulf %90, %91 : vector<16x1xf32>
    %cst_20 = arith.constant 9.99999996E-13 : f32
    %93 = vector.broadcast %cst_20 : f32 to vector<16x1xf32>
    %94 = arith.addf %92, %93 : vector<16x1xf32>
    %95 = math.rsqrt %94 : vector<16x1xf32>
    %96 = vector.broadcast %95 : vector<16x1xf32> to vector<16x128xf32>
    %97 = arith.mulf %87, %96 : vector<16x128xf32>
    %c1 = arith.constant 1 : index
    %c0_21 = arith.constant 0 : index
    %98 = vector.load %arg7[%c1, %c0_21] : memref<3x128xf32, #tpu.memory_space<vmem>>, vector<1x128xf32>
    %99 = vector.broadcast %98 : vector<1x128xf32> to vector<16x128xf32>
    %100 = arith.mulf %97, %99 : vector<16x128xf32>
    %c2 = arith.constant 2 : index
    %c0_22 = arith.constant 0 : index
    %101 = vector.load %arg7[%c2, %c0_22] : memref<3x128xf32, #tpu.memory_space<vmem>>, vector<1x128xf32>
    %102 = vector.broadcast %101 : vector<1x128xf32> to vector<16x128xf32>
    %103 = arith.addf %100, %102 : vector<16x128xf32>
    %c0_23 = arith.constant 0 : index
    %c0_24 = arith.constant 0 : index
    %104 = vector.load %arg8[%c0_23, %c0_24] : memref<16x128xf32, #tpu.memory_space<vmem>>, vector<16x128xf32>
    tpu.vector_store %arg8[%c0_23, %c0_24], %103 {strides = array<i32>} : memref<16x128xf32, #tpu.memory_space<vmem>>, vector<16x128xf32>,
    return
  }
  func.func @transform_0(%arg0: i32) -> (i32, i32) {
    %c0_i32 = arith.constant 0 : i32
    %c0_i32_0 = arith.constant 0 : i32
    return %arg0, %c0_i32 : i32, i32
  }
  func.func @transform_1(%arg0: i32) -> (i32, i32) {
    %c0_i32 = arith.constant 0 : i32
    %c0_i32_0 = arith.constant 0 : i32
    return %arg0, %c0_i32 : i32, i32
  }
  func.func @transform_2(%arg0: i32) -> (i32, i32) {
    %c0_i32 = arith.constant 0 : i32
    %c0_i32_0 = arith.constant 0 : i32
    return %arg0, %c0_i32 : i32, i32
  }
  func.func @transform_3(%arg0: i32) -> (i32, i32) {
    %c0_i32 = arith.constant 0 : i32
    %c0_i32_0 = arith.constant 0 : i32
    %c0_i32_1 = arith.constant 0 : i32
    return %c0_i32, %c0_i32_0 : i32, i32
  }
  func.func @transform_4(%arg0: i32) -> (i32, i32) {
    %c0_i32 = arith.constant 0 : i32
    %c0_i32_0 = arith.constant 0 : i32
    %c0_i32_1 = arith.constant 0 : i32
    return %c0_i32, %c0_i32_0 : i32, i32
  }
  func.func @transform_5(%arg0: i32) -> (i32, i32) {
    %c0_i32 = arith.constant 0 : i32
    %c0_i32_0 = arith.constant 0 : i32
    %c0_i32_1 = arith.constant 0 : i32
    return %c0_i32, %c0_i32_0 : i32, i32
  }
  func.func @transform_6(%arg0: i32) -> (i32, i32) {
    %c0_i32 = arith.constant 0 : i32
    %c0_i32_0 = arith.constant 0 : i32
    %c0_i32_1 = arith.constant 0 : i32
    return %c0_i32, %c0_i32_0 : i32, i32
  }
  func.func @transform_7(%arg0: i32) -> (i32, i32) {
    %c0_i32 = arith.constant 0 : i32
    %c0_i32_0 = arith.constant 0 : i32
    return %arg0, %c0_i32 : i32, i32
  }
}

module attributes {stable_mosaic.version = 11 : i64} {
  func.func @_visual_emb_kernel(%arg0: i32, %arg1: memref<16x32xf32, #tpu.memory_space<vmem>>, %arg2: memref<16x7xf32, #tpu.memory_space<vmem>>, %arg3: memref<16x1xi32, #tpu.memory_space<vmem>>, %arg4: memref<32x128xbf16, #tpu.memory_space<vmem>>, %arg5: memref<7x128xf32, #tpu.memory_space<vmem>>, %arg6: memref<2x128xf32, #tpu.memory_space<vmem>>, %arg7: memref<3x128xf32, #tpu.memory_space<vmem>>, %arg8: memref<16x128xf32, #tpu.memory_space<vmem>>) attributes {dimension_semantics = [#tpu.dimension_semantics<parallel>], iteration_bounds = array<i64: 1>, scalar_prefetch = 0 : i64, scratch_operands = 0 : i64, tpu.core_type = #tpu.core_type<tc>, window_params = [{transform_indices = @transform_0, window_bounds = array<i64: 16, 32>}, {transform_indices = @transform_1, window_bounds = array<i64: 16, 7>}, {transform_indices = @transform_2, window_bounds = array<i64: 16, 1>}, {pipeline_mode = #tpu.pipeline_mode<synchronous>, transform_indices = @transform_3, window_bounds = array<i64: 32, 128>}, {pipeline_mode = #tpu.pipeline_mode<synchronous>, transform_indices = @transform_4, window_bounds = array<i64: 7, 128>}, {pipeline_mode = #tpu.pipeline_mode<synchronous>, transform_indices = @transform_5, window_bounds = array<i64: 2, 128>}, {pipeline_mode = #tpu.pipeline_mode<synchronous>, transform_indices = @transform_6, window_bounds = array<i64: 3, 128>}, {transform_indices = @transform_7, window_bounds = array<i64: 16, 128>}]} {
    %c0 = arith.constant 0 : index
    %c0_0 = arith.constant 0 : index
    %0 = vector.load %arg1[%c0, %c0_0] : memref<16x32xf32, #tpu.memory_space<vmem>>, vector<16x32xf32>
    %1 = arith.truncf %0 : vector<16x32xf32> to vector<16x32xbf16>
    %c0_1 = arith.constant 0 : index
    %c0_2 = arith.constant 0 : index
    %2 = vector.load %arg4[%c0_1, %c0_2] : memref<32x128xbf16, #tpu.memory_space<vmem>>, vector<32x128xbf16>
    %cst = arith.constant dense<0.000000e+00> : vector<16x128xf32>
    %3 = tpu.matmul %1, %2, %cst {dimension_numbers = #tpu.dot_dimension_numbers<[1], [0], [0], [1], [0, 0, 1, 1], [], []>} : vector<16x32xbf16>, vector<32x128xbf16>, vector<16x128xf32> -> vector<16x128xf32>
    %c0_3 = arith.constant 0 : index
    %c0_4 = arith.constant 0 : index
    %4 = vector.load %arg2[%c0_3, %c0_4] : memref<16x7xf32, #tpu.memory_space<vmem>>, vector<16x7xf32>
    %c0_5 = arith.constant 0 : index
    %c0_6 = arith.constant 0 : index
    %5 = vector.load %arg5[%c0_5, %c0_6] : memref<7x128xf32, #tpu.memory_space<vmem>>, vector<7x128xf32>
    %6 = vector.extract_strided_slice %4 {offsets = [0, 0], sizes = [16, 1], strides = [1, 1]} : vector<16x7xf32> to vector<16x1xf32>
    %7 = vector.extract_strided_slice %5 {offsets = [0, 0], sizes = [1, 128], strides = [1, 1]} : vector<7x128xf32> to vector<1x128xf32>
    %8 = vector.broadcast %6 : vector<16x1xf32> to vector<16x128xf32>
    %9 = vector.broadcast %7 : vector<1x128xf32> to vector<16x128xf32>
    %10 = arith.mulf %8, %9 : vector<16x128xf32>
    %11 = arith.addf %3, %10 : vector<16x128xf32>
    %12 = vector.extract_strided_slice %4 {offsets = [0, 1], sizes = [16, 1], strides = [1, 1]} : vector<16x7xf32> to vector<16x1xf32>
    %13 = vector.extract_strided_slice %5 {offsets = [1, 0], sizes = [1, 128], strides = [1, 1]} : vector<7x128xf32> to vector<1x128xf32>
    %14 = vector.broadcast %12 : vector<16x1xf32> to vector<16x128xf32>
    %15 = vector.broadcast %13 : vector<1x128xf32> to vector<16x128xf32>
    %16 = arith.mulf %14, %15 : vector<16x128xf32>
    %17 = arith.addf %11, %16 : vector<16x128xf32>
    %18 = vector.extract_strided_slice %4 {offsets = [0, 2], sizes = [16, 1], strides = [1, 1]} : vector<16x7xf32> to vector<16x1xf32>
    %19 = vector.extract_strided_slice %5 {offsets = [2, 0], sizes = [1, 128], strides = [1, 1]} : vector<7x128xf32> to vector<1x128xf32>
    %20 = vector.broadcast %18 : vector<16x1xf32> to vector<16x128xf32>
    %21 = vector.broadcast %19 : vector<1x128xf32> to vector<16x128xf32>
    %22 = arith.mulf %20, %21 : vector<16x128xf32>
    %23 = arith.addf %17, %22 : vector<16x128xf32>
    %24 = vector.extract_strided_slice %4 {offsets = [0, 3], sizes = [16, 1], strides = [1, 1]} : vector<16x7xf32> to vector<16x1xf32>
    %25 = vector.extract_strided_slice %5 {offsets = [3, 0], sizes = [1, 128], strides = [1, 1]} : vector<7x128xf32> to vector<1x128xf32>
    %26 = vector.broadcast %24 : vector<16x1xf32> to vector<16x128xf32>
    %27 = vector.broadcast %25 : vector<1x128xf32> to vector<16x128xf32>
    %28 = arith.mulf %26, %27 : vector<16x128xf32>
    %29 = arith.addf %23, %28 : vector<16x128xf32>
    %30 = vector.extract_strided_slice %4 {offsets = [0, 4], sizes = [16, 1], strides = [1, 1]} : vector<16x7xf32> to vector<16x1xf32>
    %31 = vector.extract_strided_slice %5 {offsets = [4, 0], sizes = [1, 128], strides = [1, 1]} : vector<7x128xf32> to vector<1x128xf32>
    %32 = vector.broadcast %30 : vector<16x1xf32> to vector<16x128xf32>
    %33 = vector.broadcast %31 : vector<1x128xf32> to vector<16x128xf32>
    %34 = arith.mulf %32, %33 : vector<16x128xf32>
    %35 = arith.addf %29, %34 : vector<16x128xf32>
    %36 = vector.extract_strided_slice %4 {offsets = [0, 5], sizes = [16, 1], strides = [1, 1]} : vector<16x7xf32> to vector<16x1xf32>
    %37 = vector.extract_strided_slice %5 {offsets = [5, 0], sizes = [1, 128], strides = [1, 1]} : vector<7x128xf32> to vector<1x128xf32>
    %38 = vector.broadcast %36 : vector<16x1xf32> to vector<16x128xf32>
    %39 = vector.broadcast %37 : vector<1x128xf32> to vector<16x128xf32>
    %40 = arith.mulf %38, %39 : vector<16x128xf32>
    %41 = arith.addf %35, %40 : vector<16x128xf32>
    %42 = vector.extract_strided_slice %4 {offsets = [0, 6], sizes = [16, 1], strides = [1, 1]} : vector<16x7xf32> to vector<16x1xf32>
    %43 = vector.extract_strided_slice %5 {offsets = [6, 0], sizes = [1, 128], strides = [1, 1]} : vector<7x128xf32> to vector<1x128xf32>
    %44 = vector.broadcast %42 : vector<16x1xf32> to vector<16x128xf32>
    %45 = vector.broadcast %43 : vector<1x128xf32> to vector<16x128xf32>
    %46 = arith.mulf %44, %45 : vector<16x128xf32>
    %47 = arith.addf %41, %46 : vector<16x128xf32>
    %c0_7 = arith.constant 0 : index
    %c0_8 = arith.constant 0 : index
    %48 = vector.load %arg3[%c0_7, %c0_8] : memref<16x1xi32, #tpu.memory_space<vmem>>, vector<16x1xi32>
    %c0_9 = arith.constant 0 : index
    %c0_10 = arith.constant 0 : index
    %49 = vector.load %arg6[%c0_9, %c0_10] : memref<2x128xf32, #tpu.memory_space<vmem>>, vector<2x128xf32>
    %c0_i32 = arith.constant 0 : i32
    %50 = vector.broadcast %c0_i32 : i32 to vector<16x1xi32>
    %51 = arith.cmpi eq, %48, %50 : vector<16x1xi32>
    %52 = vector.extract_strided_slice %49 {offsets = [0, 0], sizes = [1, 128], strides = [1, 1]} : vector<2x128xf32> to vector<1x128xf32>
    %cst_11 = arith.constant 0.000000e+00 : f32
    %53 = vector.shape_cast %51 : vector<16x1xi1> to vector<16x1xi1>
    %54 = vector.broadcast %53 : vector<16x1xi1> to vector<16x128xi1>
    %55 = vector.shape_cast %52 : vector<1x128xf32> to vector<1x128xf32>
    %56 = vector.broadcast %55 : vector<1x128xf32> to vector<16x128xf32>
    %57 = vector.broadcast %cst_11 : f32 to vector<16x128xf32>
    %58 = arith.select %54, %56, %57 : vector<16x128xi1>, vector<16x128xf32>
    %c1_i32 = arith.constant 1 : i32
    %59 = vector.broadcast %c1_i32 : i32 to vector<16x1xi32>
    %60 = arith.cmpi eq, %48, %59 : vector<16x1xi32>
    %61 = vector.extract_strided_slice %49 {offsets = [1, 0], sizes = [1, 128], strides = [1, 1]} : vector<2x128xf32> to vector<1x128xf32>
    %62 = vector.shape_cast %60 : vector<16x1xi1> to vector<16x1xi1>
    %63 = vector.broadcast %62 : vector<16x1xi1> to vector<16x128xi1>
    %64 = vector.shape_cast %61 : vector<1x128xf32> to vector<1x128xf32>
    %65 = vector.broadcast %64 : vector<1x128xf32> to vector<16x128xf32>
    %66 = arith.select %63, %65, %58 : vector<16x128xi1>, vector<16x128xf32>
    %67 = arith.addf %47, %66 : vector<16x128xf32>
    %c0_12 = arith.constant 0 : index
    %c0_13 = arith.constant 0 : index
    %68 = vector.load %arg7[%c0_12, %c0_13] : memref<3x128xf32, #tpu.memory_space<vmem>>, vector<1x128xf32>
    %69 = vector.broadcast %68 : vector<1x128xf32> to vector<16x128xf32>
    %70 = arith.addf %67, %69 : vector<16x128xf32>
    %71 = tpu.iota {dimensions = array<i32: 1>} : vector<1x128xi32>
    %c32_i32 = arith.constant 32 : i32
    %72 = vector.broadcast %c32_i32 : i32 to vector<1x128xi32>
    %73 = arith.cmpi slt, %71, %72 : vector<1x128xi32>
    %cst_14 = arith.constant 0.000000e+00 : f32
    %74 = vector.shape_cast %73 : vector<1x128xi1> to vector<1x128xi1>
    %75 = vector.broadcast %74 : vector<1x128xi1> to vector<16x128xi1>
    %76 = vector.broadcast %cst_14 : f32 to vector<16x128xf32>
    %77 = arith.select %75, %70, %76 : vector<16x128xi1>, vector<16x128xf32>
    %cst_15 = arith.constant dense<0.000000e+00> : vector<16xf32>
    %78 = vector.multi_reduction <add>, %77, %cst_15 [1] : vector<16x128xf32> to vector<16xf32>
    %79 = vector.shape_cast %78 : vector<16xf32> to vector<16x1xf32>
    %cst_16 = arith.constant 3.125000e-02 : f32
    %80 = vector.broadcast %cst_16 : f32 to vector<16x1xf32>
    %81 = arith.mulf %79, %80 : vector<16x1xf32>
    %82 = vector.broadcast %81 : vector<16x1xf32> to vector<16x128xf32>
    %83 = arith.subf %77, %82 : vector<16x128xf32>
    %cst_17 = arith.constant 0.000000e+00 : f32
    %84 = vector.shape_cast %73 : vector<1x128xi1> to vector<1x128xi1>
    %85 = vector.broadcast %84 : vector<1x128xi1> to vector<16x128xi1>
    %86 = vector.broadcast %cst_17 : f32 to vector<16x128xf32>
    %87 = arith.select %85, %83, %86 : vector<16x128xi1>, vector<16x128xf32>
    %88 = arith.mulf %87, %87 : vector<16x128xf32>
    %cst_18 = arith.constant dense<0.000000e+00> : vector<16xf32>
    %89 = vector.multi_reduction <add>, %88, %cst_18 [1] : vector<16x128xf32> to vector<16xf32>
    %90 = vector.shape_cast %89 : vector<16xf32> to vector<16x1xf32>
    %cst_19 = arith.constant 3.125000e-02 : f32
    %91 = vector.broadcast %cst_19 : f32 to vector<16x1xf32>
    %92 = arith.mulf %90, %91 : vector<16x1xf32>
    %cst_20 = arith.constant 9.99999996E-13 : f32
    %93 = vector.broadcast %cst_20 : f32 to vector<16x1xf32>
    %94 = arith.addf %92, %93 : vector<16x1xf32>
    %95 = math.rsqrt %94 : vector<16x1xf32>
    %96 = vector.broadcast %95 : vector<16x1xf32> to vector<16x128xf32>
    %97 = arith.mulf %87, %96 : vector<16x128xf32>
    %c1 = arith.constant 1 : index
    %c0_21 = arith.constant 0 : index
    %98 = vector.load %arg7[%c1, %c0_21] : memref<3x128xf32, #tpu.memory_space<vmem>>, vector<1x128xf32>
    %99 = vector.broadcast %98 : vector<1x128xf32> to vector<16x128xf32>
    %100 = arith.mulf %97, %99 : vector<16x128xf32>
    %c2 = arith.constant 2 : index
    %c0_22 = arith.constant 0 : index
    %101 = vector.load %arg7[%c2, %c0_22] : memref<3x128xf32, #tpu.memory_space<vmem>>, vector<1x128xf32>
    %102 = vector.broadcast %101 : vector<1x128xf32> to vector<16x128xf32>
    %103 = arith.addf %100, %102 : vector<16x128xf32>
    %c0_23 = arith.constant 0 : index
    %c0_24 = arith.constant 0 : index
    %104 = vector.load %arg8[%c0_23, %c0_24] : memref<16x128xf32, #tpu.memory_space<vmem>>, vector<16x128xf32>
    tpu.vector_store %arg8[%c0_23, %c0_24], %103 {strides = array<i32>} : memref<16x128xf32, #tpu.memory_space<vmem>>, vector<16x128xf32>,
    return
  }
  func.func @transform_0(%arg0: i32) -> (i32, i32) {
    %c0_i32 = arith.constant 0 : i32
    %c0_i32_0 = arith.constant 0 : i32
    return %arg0, %c0_i32 : i32, i32
  }
  func.func @transform_1(%arg0: i32) -> (i32, i32) {
    %c0_i32 = arith.constant 0 : i32
    %c0_i32_0 = arith.constant 0 : i32
    return %arg0, %c0_i32 : i32, i32
  }
  func.func @transform_2(%arg0: i32) -> (i32, i32) {
    %c0_i32 = arith.constant 0 : i32
    %c0_i32_0 = arith.constant 0 : i32
    return %arg0, %c0_i32 : i32, i32
  }
  func.func @transform_3(%arg0: i32) -> (i32, i32) {
    %c0_i32 = arith.constant 0 : i32
    %c0_i32_0 = arith.constant 0 : i32
    %c0_i32_1 = arith.constant 0 : i32
    return %c0_i32, %c0_i32_0 : i32, i32
  }
  func.func @transform_4(%arg0: i32) -> (i32, i32) {
    %c0_i32 = arith.constant 0 : i32
    %c0_i32_0 = arith.constant 0 : i32
    %c0_i32_1 = arith.constant 0 : i32
    return %c0_i32, %c0_i32_0 : i32, i32
  }
  func.func @transform_5(%arg0: i32) -> (i32, i32) {
    %c0_i32 = arith.constant 0 : i32
    %c0_i32_0 = arith.constant 0 : i32
    %c0_i32_1 = arith.constant 0 : i32
    return %c0_i32, %c0_i32_0 : i32, i32
  }
  func.func @transform_6(%arg0: i32) -> (i32, i32) {
    %c0_i32 = arith.constant 0 : i32
    %c0_i32_0 = arith.constant 0 : i32
    %c0_i32_1 = arith.constant 0 : i32
    return %c0_i32, %c0_i32_0 : i32, i32
  }
  func.func @transform_7(%arg0: i32) -> (i32, i32) {
    %c0_i32 = arith.constant 0 : i32
    %c0_i32_0 = arith.constant 0 : i32
    return %arg0, %c0_i32 : i32, i32
  }
}

</mosaic_0001>

<llo_original>
// kernel: tpu_custom_call.1
$region0: #{tpu_custom_call.1}
  #allocation0 [shape = 'u32[]', space=smem, size = 0x4, offset = 0x4, fixed_abs, tag = 'smem constant byte address 0x4 - core index']
  #allocation1 [shape = 'u32[72,128]{1,0:T(1,128)}', space=vmem, size = 0x9000, scoped, tag = 'internal scratch']
  %s0 = inlined_call_operand.vmem [shape: f32[16,32], index: 0, kind: input, shape index: {}]
  %s1 = inlined_call_operand.vmem [shape: f32[16,7], index: 1, kind: input, shape index: {}]
  %s2 = inlined_call_operand.vmem [shape: s32[16,1], index: 2, kind: input, shape index: {}]
  %s3 = inlined_call_operand.vmem [shape: bf16[32,128], index: 3, kind: input, shape index: {}]
  %s4 = inlined_call_operand.vmem [shape: f32[7,128], index: 4, kind: input, shape index: {}]
  %s5 = inlined_call_operand.hbm [shape: f32[2,128], index: 5, kind: input, shape index: {}]
  %s6 = inlined_call_operand.vmem [shape: f32[3,128], index: 6, kind: input, shape index: {}]
  %s7 = inlined_call_operand.hbm [shape: f32[16,128], index: 7, kind: output, shape index: {}]
  %s8 = sld [smem:[#allocation0]]
  $region42: #{tpu_custom_call.1} parent=0
    _
  %s10 = ssub.s32 1, %s8
  %s11 = scalar_select 0, %s10, %s8
  $region1: #{tpu_custom_call.1} parent=0
    #allocation2 [shape = 'u8[1024]{0}', space=vmem, size = 0x400, scoped, tag = 'input window, operand 5, single buffered']
    #allocation3 [shape = 's32[1]{0}', space=sflag, size = 0x4, scoped, tag = 'scoped memory for tpu_custom_call.1']
    #allocation4 [shape = 's32[1]{0}', space=sflag, size = 0x4, scoped, tag = 'scoped memory for tpu_custom_call.1']
    #allocation5 [shape = 'u8[8192]{0}', space=vmem, size = 0x2000, scoped, tag = 'output window, operand 0, single buffered']
    %12 = vsyncpa [#allocation3], 0
    %13 = vsyncpa [#allocation4], 0
    // Predicated region
    $region2: #{tpu_custom_call.1} parent=1 // pred_check
      _
    $region3: #{tpu_custom_call.1} parent=1 // pred_check_branch
      %15 = sbr.rel (0) target = $region5
    $region4: #{tpu_custom_call.1} parent=1 // pred_region
      _
    $region5: #{tpu_custom_call.1} parent=1 // pred_fallthru
      _
    // Predicated region
    $region6: #{tpu_custom_call.1} parent=1 // pred_check
      _
    $region7: #{tpu_custom_call.1} parent=1 // pred_check_branch
      %17 = sbr.rel (0) target = $region9
    $region8: #{tpu_custom_call.1} parent=1 // pred_region
      _
    $region9: #{tpu_custom_call.1} parent=1 // pred_fallthru
      _
    // Predicated region
    $region10: #{tpu_custom_call.1} parent=1 // pred_check
      _
    $region11: #{tpu_custom_call.1} parent=1 // pred_check_branch
      %19 = sbr.rel (0) target = $region13
    $region12: #{tpu_custom_call.1} parent=1 // pred_region
      _
    $region13: #{tpu_custom_call.1} parent=1 // pred_fallthru
      _
    // Predicated region
    $region14: #{tpu_custom_call.1} parent=1 // pred_check
      _
    $region15: #{tpu_custom_call.1} parent=1 // pred_check_branch
      %21 = sbr.rel (0) target = $region17
    $region16: #{tpu_custom_call.1} parent=1 // pred_region
      _
    $region17: #{tpu_custom_call.1} parent=1 // pred_fallthru
      _
    // Predicated region
    $region18: #{tpu_custom_call.1} parent=1 // pred_check
      _
    $region19: #{tpu_custom_call.1} parent=1 // pred_check_branch
      %23 = sbr.rel (0) target = $region21
    $region20: #{tpu_custom_call.1} parent=1 // pred_region
      _
    $region21: #{tpu_custom_call.1} parent=1 // pred_fallthru
      _
    // Predicated region
    $region22: #{tpu_custom_call.1} parent=1 // pred_check
      _
    $region23: #{tpu_custom_call.1} parent=1 // pred_check_branch
      %25 = sbr.rel (0) target = $region25
    $region24: #{tpu_custom_call.1} parent=1 // pred_region
      %27 = vsyncadd [#allocation3], 0
      %s29 = sshll.u32 %s5, 4
      %s30 = int_to_ptr.hbm [resolvable:$true] %s29
      %s31 = sshll.u32 [#allocation2], 4
      %s32 = int_to_ptr.vmem [resolvable:$true] %s31
      %34 = dma.hbm_to_vmem [thread:$0]  %s30, 32, %s32, [#allocation3]
    $region25: #{tpu_custom_call.1} parent=1 // pred_fallthru
      _
    // Predicated region
    $region26: #{tpu_custom_call.1} parent=1 // pred_check
      _
    $region27: #{tpu_custom_call.1} parent=1 // pred_check_branch
      %36 = sbr.rel (0) target = $region29
    $region28: #{tpu_custom_call.1} parent=1 // pred_region
      _
    $region29: #{tpu_custom_call.1} parent=1 // pred_fallthru
      _
    // Predicated region
    $region30: #{tpu_custom_call.1} parent=1 // pred_check
      _
    $region31: #{tpu_custom_call.1} parent=1 // pred_check_branch
      %38 = sbr.rel (0) target = $region33
    $region32: #{tpu_custom_call.1} parent=1 // pred_region
      %40 = dma.done [#allocation3], 32
    $region33: #{tpu_custom_call.1} parent=1 // pred_fallthru
      _
    %v42 = vld [vmem:[%s0] sm:$0xff]
    %v43 = vld [vmem:[%s0 + $0x8] sm:$0xff]
    %v44 = vpack.c.bf16 %v43, %v42
    %v45 = vld [vmem:[%s3] sm:$0xf]
    %v46 = vld [vmem:[%s3 + $0x4] sm:$0xf]
    %v47 = vld [vmem:[%s3 + $0x8] sm:$0xf]
    %v48 = vld [vmem:[%s3 + $0xc] sm:$0xf]
    %v49 = vld [vmem:[%s1] sm:$0xff]
    %v50 = vld [vmem:[%s1 + $0x8] sm:$0xff]
    %v51 = vld [vmem:[%s4] sm:$0x7f]
    %53 = vset.pattern.permute.xlu0 0
    %54 = vperm.xlu0 %53, %v49
    %v55 = vpop.permute.xlu0 %54
    %58 = vset.pattern.permute.xlu0 0
    %59 = vperm.xlu0 %58, %v50
    %v60 = vpop.permute.xlu0 %59
    %v62 = vperm.slane %v51, 0
    %v63 = vmul.f32 %v55, %v62
    %v64 = vmul.f32 %v60, %v62
    %v69 = vunpack.c.l.b16 %v45
    %v70 = vunpack.c.l.b16 %v46
    %v71 = vunpack.c.l.b16 %v47
    %v72 = vunpack.c.l.b16 %v48
    %v73 = vpack.c.b16 %v70, %v69
    %v74 = vpack.c.b16 %v72, %v71
    %vm77 = vcmask 261120
    %v79 = vsel %vm77, %v44, 0
    %81 = vmatpush.bf16.msra.mxu0 0
    %82 = vmatpush.bf16.msra.mxu0 0
    %83 = vmatpush.bf16.msra.mxu0 0
    %84 = vmatpush.bf16.msra.mxu0 0
    %85 = vmatpush.bf16.msra.mxu0 0
    %86 = vmatpush.bf16.msra.mxu0 0
    %87 = vmatpush.bf16.msra.mxu0 %v74
    %88 = vmatpush.bf16.msra.mxu0 %v73
    %89 = vmatmul.bf16.gmra.mxu0 %v79
    %v90 = vpop.f32.mrf.mxu0
    %v91 = vadd.f32 %v63, %v90
    %v92 = vpop.f32.mrf.mxu0
    %v93 = vadd.f32 %v64, %v92
    %94 = vdwg.mxu0
    %95 = vset.pattern.permute.xlu0 1
    %96 = vperm.xlu0 %95, %v49
    %v97 = vpop.permute.xlu0 %96
    %99 = vset.pattern.permute.xlu0 1
    %100 = vperm.xlu0 %99, %v50
    %v101 = vpop.permute.xlu0 %100
    %v103 = vperm.slane %v51, 1
    %v104 = vmul.f32 %v97, %v103
    %v105 = vmul.f32 %v101, %v103
    %v106 = vadd.f32 %v91, %v104
    %v107 = vadd.f32 %v93, %v105
    %108 = vset.pattern.permute.xlu0 2
    %109 = vperm.xlu0 %108, %v49
    %v110 = vpop.permute.xlu0 %109
    %112 = vset.pattern.permute.xlu0 2
    %113 = vperm.xlu0 %112, %v50
    %v114 = vpop.permute.xlu0 %113
    %v116 = vperm.slane %v51, 2
    %v117 = vmul.f32 %v110, %v116
    %v118 = vmul.f32 %v114, %v116
    %v119 = vadd.f32 %v106, %v117
    %v120 = vadd.f32 %v107, %v118
    %121 = vset.pattern.permute.xlu0 3
    %122 = vperm.xlu0 %121, %v49
    %v123 = vpop.permute.xlu0 %122
    %125 = vset.pattern.permute.xlu0 3
    %126 = vperm.xlu0 %125, %v50
    %v127 = vpop.permute.xlu0 %126
    %v129 = vperm.slane %v51, 3
    %v130 = vmul.f32 %v123, %v129
    %v131 = vmul.f32 %v127, %v129
    %v132 = vadd.f32 %v119, %v130
    %v133 = vadd.f32 %v120, %v131
    %134 = vset.pattern.permute.xlu0 4
    %135 = vperm.xlu0 %134, %v49
    %v136 = vpop.permute.xlu0 %135
    %138 = vset.pattern.permute.xlu0 4
    %139 = vperm.xlu0 %138, %v50
    %v140 = vpop.permute.xlu0 %139
    %v142 = vperm.slane %v51, 4
    %v143 = vmul.f32 %v136, %v142
    %v144 = vmul.f32 %v140, %v142
    %v145 = vadd.f32 %v132, %v143
    %v146 = vadd.f32 %v133, %v144
    %147 = vset.pattern.permute.xlu0 5
    %148 = vperm.xlu0 %147, %v49
    %v149 = vpop.permute.xlu0 %148
    %151 = vset.pattern.permute.xlu0 5
    %152 = vperm.xlu0 %151, %v50
    %v153 = vpop.permute.xlu0 %152
    %v155 = vperm.slane %v51, 5
    %v156 = vmul.f32 %v149, %v155
    %v157 = vmul.f32 %v153, %v155
    %v158 = vadd.f32 %v145, %v156
    %v159 = vadd.f32 %v146, %v157
    %160 = vset.pattern.permute.xlu0 6
    %161 = vperm.xlu0 %160, %v49
    %v162 = vpop.permute.xlu0 %161
    %164 = vset.pattern.permute.xlu0 6
    %165 = vperm.xlu0 %164, %v50
    %v166 = vpop.permute.xlu0 %165
    %v168 = vperm.slane %v51, 6
    %v169 = vmul.f32 %v162, %v168
    %v170 = vmul.f32 %v166, %v168
    %v171 = vadd.f32 %v158, %v169
    %v172 = vadd.f32 %v159, %v170
    %v173 = vld [vmem:[%s2] sm:$0xff]
    %v174 = vld [vmem:[%s2 + $0x8] sm:$0xff]
    %v175 = vld [vmem:[#allocation2] sm:$0x3]
    %vm176 = vcmp.eq.s32.totalorder %v173, 0
    %vm177 = vcmp.eq.s32.totalorder %v174, 0
    %v178 = vsel %vm176, 1, 0
    %v179 = vsel %vm177, 1, 0
    %180 = vset.pattern.permute.xlu0 0
    %181 = vperm.xlu0 %180, %v178
    %v182 = vpop.permute.xlu0 %181
    %183 = vset.pattern.permute.xlu0 0
    %184 = vperm.xlu0 %183, %v179
    %v185 = vpop.permute.xlu0 %184
    %vm186 = vcmp.eq.s32.totalorder %v182, 1
    %vm187 = vcmp.eq.s32.totalorder %v185, 1
    %v188 = vperm.slane %v175, 0
    %v189 = vsel %vm186, %v188, 0.0
    %v190 = vsel %vm187, %v188, 0.0
    %vm191 = vcmp.eq.s32.totalorder %v173, 1
    %vm192 = vcmp.eq.s32.totalorder %v174, 1
    %v193 = vsel %vm191, 1, 0
    %v194 = vsel %vm192, 1, 0
    %195 = vset.pattern.permute.xlu0 0
    %196 = vperm.xlu0 %195, %v193
    %v197 = vpop.permute.xlu0 %196
    %198 = vset.pattern.permute.xlu0 0
    %199 = vperm.xlu0 %198, %v194
    %v200 = vpop.permute.xlu0 %199
    %vm201 = vcmp.eq.s32.totalorder %v197, 1
    %vm202 = vcmp.eq.s32.totalorder %v200, 1
    %v203 = vperm.slane %v175, 1
    %v204 = vsel %vm201, %v203, %v189
    %v205 = vsel %vm202, %v203, %v190
    %v206 = vadd.f32 %v171, %v204
    %v207 = vadd.f32 %v172, %v205
    %v208 = vld [vmem:[%s6] sm:$0x1]
    %v209 = vperm.slane %v208, 0
    %v210 = vadd.f32 %v206, %v209
    %v211 = vadd.f32 %v207, %v209
    %v212 = vlaneseq
    %v213 = vand.u32 %v212, 127
    %vm214 = vcmp.lt.s32.totalorder %v213, 32
    %v215 = vsel %vm214, 1, 0
    %vm216 = vcmp.eq.s32.totalorder %v215, 1
    %v217 = vsel %vm216, %v210, 0.0
    %v218 = vsel %vm216, %v211, 0.0
    %219 = vadd.xlane.f32.xlu0 %v217
    %v220 = vpop.xlane.xlu0 %219
    %221 = vadd.xlane.f32.xlu0 %v218
    %v222 = vpop.xlane.xlu0 %221
    %v223 = vmul.f32 %v220, 0.03125
    %v224 = vmul.f32 %v222, 0.03125
    %v225 = vsub.f32 %v217, %v223
    %v226 = vsub.f32 %v218, %v224
    %v227 = vsel %vm216, %v225, 0.0
    %v228 = vsel %vm216, %v226, 0.0
    %v229 = vmul.f32 %v227, %v227
    %v230 = vmul.f32 %v228, %v228
    %231 = vadd.xlane.f32.xlu0 %v229
    %v232 = vpop.xlane.xlu0 %231
    %233 = vadd.xlane.f32.xlu0 %v230
    %v234 = vpop.xlane.xlu0 %233
    %v235 = vmul.f32 %v232, 0.03125
    %v236 = vmul.f32 %v234, 0.03125
    %v237 = vadd.f32 %v235, 1e-12
    %v238 = vadd.f32 %v236, 1e-12
    %v239 = vrsqrt.pop %v237
    %v240 = vmul.f32 %v239, %v237
    %v241 = vmul.f32 %v240, %v239
    %v242 = vmul.f32 0.5, %v241
    %v243 = vsub.f32 1.5, %v242
    %v244 = vmul.f32 %v239, %v243
    %vm245 = vweird.f32 %v237
    %vm246 = vweird.f32 %v239
    %vm247 = vmor %vm245, %vm246
    %v248 = vsel %vm247, %v239, %v244
    %v249 = vrsqrt.pop %v238
    %v250 = vmul.f32 %v249, %v238
    %v251 = vmul.f32 %v250, %v249
    %v252 = vmul.f32 0.5, %v251
    %v253 = vsub.f32 1.5, %v252
    %v254 = vmul.f32 %v249, %v253
    %vm255 = vweird.f32 %v238
    %vm256 = vweird.f32 %v249
    %vm257 = vmor %vm255, %vm256
    %v258 = vsel %vm257, %v249, %v254
    %v259 = vmul.f32 %v227, %v248
    %v260 = vmul.f32 %v228, %v258
    %v261 = vld [vmem:[%s6 + $0x1] sm:$0x1]
    %v262 = vperm.slane %v261, 0
    %v263 = vmul.f32 %v259, %v262
    %v264 = vmul.f32 %v260, %v262
    %v265 = vld [vmem:[%s6 + $0x2] sm:$0x1]
    %v266 = vperm.slane %v265, 0
    %v267 = vadd.f32 %v263, %v266
    %v268 = vadd.f32 %v264, %v266
    %269 = vst [vmem:[#allocation5] sm:$0xff] %v267
    %270 = vst [vmem:[#allocation5 + $0x8] sm:$0xff] %v268
    // Predicated region
    $region34: #{tpu_custom_call.1} parent=1 // pred_check
      _
    $region35: #{tpu_custom_call.1} parent=1 // pred_check_branch
      %272 = sbr.rel (0) target = $region37
    $region36: #{tpu_custom_call.1} parent=1 // pred_region
      %274 = vsyncadd [#allocation4], 0
      %s275 = sshll.u32 [#allocation5], 4
      %s276 = int_to_ptr.vmem [resolvable:$true] %s275
      %s277 = sshll.u32 %s7, 4
      %s278 = int_to_ptr.hbm [resolvable:$true] %s277
      %283 = dma.vmem_to_hbm [thread:$0]  %s276, 256, %s278, [#allocation4], 128, 128, 8
    $region37: #{tpu_custom_call.1} parent=1 // pred_fallthru
      _
    // Predicated region
    $region38: #{tpu_custom_call.1} parent=1 // pred_check
      _
    $region39: #{tpu_custom_call.1} parent=1 // pred_check_branch
      %285 = sbr.rel (0) target = $region41
    $region40: #{tpu_custom_call.1} parent=1 // pred_region
      %287 = dma.done [#allocation4], 256
    $region41: #{tpu_custom_call.1} parent=1 // pred_fallthru
      _
    %288 = vsyncpa [#allocation3], 1
    %289 = vsyncpa [#allocation4], 1

// kernel: tpu_custom_call.1
$region0: #{tpu_custom_call.1}
  #allocation0 [shape = 'u32[]', space=smem, size = 0x4, offset = 0x4, fixed_abs, tag = 'smem constant byte address 0x4 - core index']
  #allocation1 [shape = 'u32[72,128]{1,0:T(1,128)}', space=vmem, size = 0x9000, scoped, tag = 'internal scratch']
  %s0 = inlined_call_operand.vmem [shape: f32[16,32], index: 0, kind: input, shape index: {}]
  %s1 = inlined_call_operand.vmem [shape: f32[16,7], index: 1, kind: input, shape index: {}]
  %s2 = inlined_call_operand.vmem [shape: s32[16,1], index: 2, kind: input, shape index: {}]
  %s3 = inlined_call_operand.vmem [shape: bf16[32,128], index: 3, kind: input, shape index: {}]
  %s4 = inlined_call_operand.vmem [shape: f32[7,128], index: 4, kind: input, shape index: {}]
  %s5 = inlined_call_operand.hbm [shape: f32[2,128], index: 5, kind: input, shape index: {}]
  %s6 = inlined_call_operand.vmem [shape: f32[3,128], index: 6, kind: input, shape index: {}]
  %s7 = inlined_call_operand.hbm [shape: f32[16,128], index: 7, kind: output, shape index: {}]
  %s8 = sld [smem:[#allocation0]]
  $region42: #{tpu_custom_call.1} parent=0
    _
  %s10 = ssub.s32 1, %s8
  %s11 = scalar_select 0, %s10, %s8
  $region1: #{tpu_custom_call.1} parent=0
    #allocation2 [shape = 'u8[1024]{0}', space=vmem, size = 0x400, scoped, tag = 'input window, operand 5, single buffered']
    #allocation3 [shape = 's32[1]{0}', space=sflag, size = 0x4, scoped, tag = 'scoped memory for tpu_custom_call.1']
    #allocation4 [shape = 's32[1]{0}', space=sflag, size = 0x4, scoped, tag = 'scoped memory for tpu_custom_call.1']
    #allocation5 [shape = 'u8[8192]{0}', space=vmem, size = 0x2000, scoped, tag = 'output window, operand 0, single buffered']
    %12 = vsyncpa [#allocation3], 0
    %13 = vsyncpa [#allocation4], 0
    // Predicated region
    $region2: #{tpu_custom_call.1} parent=1 // pred_check
      _
    $region3: #{tpu_custom_call.1} parent=1 // pred_check_branch
      %15 = sbr.rel (0) target = $region5
    $region4: #{tpu_custom_call.1} parent=1 // pred_region
      _
    $region5: #{tpu_custom_call.1} parent=1 // pred_fallthru
      _
    // Predicated region
    $region6: #{tpu_custom_call.1} parent=1 // pred_check
      _
    $region7: #{tpu_custom_call.1} parent=1 // pred_check_branch
      %17 = sbr.rel (0) target = $region9
    $region8: #{tpu_custom_call.1} parent=1 // pred_region
      _
    $region9: #{tpu_custom_call.1} parent=1 // pred_fallthru
      _
    // Predicated region
    $region10: #{tpu_custom_call.1} parent=1 // pred_check
      _
    $region11: #{tpu_custom_call.1} parent=1 // pred_check_branch
      %19 = sbr.rel (0) target = $region13
    $region12: #{tpu_custom_call.1} parent=1 // pred_region
      _
    $region13: #{tpu_custom_call.1} parent=1 // pred_fallthru
      _
    // Predicated region
    $region14: #{tpu_custom_call.1} parent=1 // pred_check
      _
    $region15: #{tpu_custom_call.1} parent=1 // pred_check_branch
      %21 = sbr.rel (0) target = $region17
    $region16: #{tpu_custom_call.1} parent=1 // pred_region
      _
    $region17: #{tpu_custom_call.1} parent=1 // pred_fallthru
      _
    // Predicated region
    $region18: #{tpu_custom_call.1} parent=1 // pred_check
      _
    $region19: #{tpu_custom_call.1} parent=1 // pred_check_branch
      %23 = sbr.rel (0) target = $region21
    $region20: #{tpu_custom_call.1} parent=1 // pred_region
      _
    $region21: #{tpu_custom_call.1} parent=1 // pred_fallthru
      _
    // Predicated region
    $region22: #{tpu_custom_call.1} parent=1 // pred_check
      _
    $region23: #{tpu_custom_call.1} parent=1 // pred_check_branch
      %25 = sbr.rel (0) target = $region25
    $region24: #{tpu_custom_call.1} parent=1 // pred_region
      %27 = vsyncadd [#allocation3], 0
      %s29 = sshll.u32 %s5, 4
      %s30 = int_to_ptr.hbm [resolvable:$true] %s29
      %s31 = sshll.u32 [#allocation2], 4
      %s32 = int_to_ptr.vmem [resolvable:$true] %s31
      %34 = dma.hbm_to_vmem [thread:$0]  %s30, 32, %s32, [#allocation3]
    $region25: #{tpu_custom_call.1} parent=1 // pred_fallthru
      _
    // Predicated region
    $region26: #{tpu_custom_call.1} parent=1 // pred_check
      _
    $region27: #{tpu_custom_call.1} parent=1 // pred_check_branch
      %36 = sbr.rel (0) target = $region29
    $region28: #{tpu_custom_call.1} parent=1 // pred_region
      _
    $region29: #{tpu_custom_call.1} parent=1 // pred_fallthru
      _
    // Predicated region
    $region30: #{tpu_custom_call.1} parent=1 // pred_check
      _
    $region31: #{tpu_custom_call.1} parent=1 // pred_check_branch
      %38 = sbr.rel (0) target = $region33
    $region32: #{tpu_custom_call.1} parent=1 // pred_region
      %40 = dma.done [#allocation3], 32
    $region33: #{tpu_custom_call.1} parent=1 // pred_fallthru
      _
    %v42 = vld [vmem:[%s0] sm:$0xff]
    %v43 = vld [vmem:[%s0 + $0x8] sm:$0xff]
    %v44 = vpack.c.bf16 %v43, %v42
    %v45 = vld [vmem:[%s3] sm:$0xf]
    %v46 = vld [vmem:[%s3 + $0x4] sm:$0xf]
    %v47 = vld [vmem:[%s3 + $0x8] sm:$0xf]
    %v48 = vld [vmem:[%s3 + $0xc] sm:$0xf]
    %v49 = vld [vmem:[%s1] sm:$0xff]
    %v50 = vld [vmem:[%s1 + $0x8] sm:$0xff]
    %v51 = vld [vmem:[%s4] sm:$0x7f]
    %53 = vset.pattern.permute.xlu0 0
    %54 = vperm.xlu0 %53, %v49
    %v55 = vpop.permute.xlu0 %54
    %58 = vset.pattern.permute.xlu0 0
    %59 = vperm.xlu0 %58, %v50
    %v60 = vpop.permute.xlu0 %59
    %v62 = vperm.slane %v51, 0
    %v63 = vmul.f32 %v55, %v62
    %v64 = vmul.f32 %v60, %v62
    %v69 = vunpack.c.l.b16 %v45
    %v70 = vunpack.c.l.b16 %v46
    %v71 = vunpack.c.l.b16 %v47
    %v72 = vunpack.c.l.b16 %v48
    %v73 = vpack.c.b16 %v70, %v69
    %v74 = vpack.c.b16 %v72, %v71
    %vm77 = vcmask 261120
    %v79 = vsel %vm77, %v44, 0
    %81 = vmatpush.bf16.msra.mxu0 0
    %82 = vmatpush.bf16.msra.mxu0 0
    %83 = vmatpush.bf16.msra.mxu0 0
    %84 = vmatpush.bf16.msra.mxu0 0
    %85 = vmatpush.bf16.msra.mxu0 0
    %86 = vmatpush.bf16.msra.mxu0 0
    %87 = vmatpush.bf16.msra.mxu0 %v74
    %88 = vmatpush.bf16.msra.mxu0 %v73
    %89 = vmatmul.bf16.gmra.mxu0 %v79
    %v90 = vpop.f32.mrf.mxu0
    %v91 = vadd.f32 %v63, %v90
    %v92 = vpop.f32.mrf.mxu0
    %v93 = vadd.f32 %v64, %v92
    %94 = vdwg.mxu0
    %95 = vset.pattern.permute.xlu0 1
    %96 = vperm.xlu0 %95, %v49
    %v97 = vpop.permute.xlu0 %96
    %99 = vset.pattern.permute.xlu0 1
    %100 = vperm.xlu0 %99, %v50
    %v101 = vpop.permute.xlu0 %100
    %v103 = vperm.slane %v51, 1
    %v104 = vmul.f32 %v97, %v103
    %v105 = vmul.f32 %v101, %v103
    %v106 = vadd.f32 %v91, %v104
    %v107 = vadd.f32 %v93, %v105
    %108 = vset.pattern.permute.xlu0 2
    %109 = vperm.xlu0 %108, %v49
    %v110 = vpop.permute.xlu0 %109
    %112 = vset.pattern.permute.xlu0 2
    %113 = vperm.xlu0 %112, %v50
    %v114 = vpop.permute.xlu0 %113
    %v116 = vperm.slane %v51, 2
    %v117 = vmul.f32 %v110, %v116
    %v118 = vmul.f32 %v114, %v116
    %v119 = vadd.f32 %v106, %v117
    %v120 = vadd.f32 %v107, %v118
    %121 = vset.pattern.permute.xlu0 3
    %122 = vperm.xlu0 %121, %v49
    %v123 = vpop.permute.xlu0 %122
    %125 = vset.pattern.permute.xlu0 3
    %126 = vperm.xlu0 %125, %v50
    %v127 = vpop.permute.xlu0 %126
    %v129 = vperm.slane %v51, 3
    %v130 = vmul.f32 %v123, %v129
    %v131 = vmul.f32 %v127, %v129
    %v132 = vadd.f32 %v119, %v130
    %v133 = vadd.f32 %v120, %v131
    %134 = vset.pattern.permute.xlu0 4
    %135 = vperm.xlu0 %134, %v49
    %v136 = vpop.permute.xlu0 %135
    %138 = vset.pattern.permute.xlu0 4
    %139 = vperm.xlu0 %138, %v50
    %v140 = vpop.permute.xlu0 %139
    %v142 = vperm.slane %v51, 4
    %v143 = vmul.f32 %v136, %v142
    %v144 = vmul.f32 %v140, %v142
    %v145 = vadd.f32 %v132, %v143
    %v146 = vadd.f32 %v133, %v144
    %147 = vset.pattern.permute.xlu0 5
    %148 = vperm.xlu0 %147, %v49
    %v149 = vpop.permute.xlu0 %148
    %151 = vset.pattern.permute.xlu0 5
    %152 = vperm.xlu0 %151, %v50
    %v153 = vpop.permute.xlu0 %152
    %v155 = vperm.slane %v51, 5
    %v156 = vmul.f32 %v149, %v155
    %v157 = vmul.f32 %v153, %v155
    %v158 = vadd.f32 %v145, %v156
    %v159 = vadd.f32 %v146, %v157
    %160 = vset.pattern.permute.xlu0 6
    %161 = vperm.xlu0 %160, %v49
    %v162 = vpop.permute.xlu0 %161
    %164 = vset.pattern.permute.xlu0 6
    %165 = vperm.xlu0 %164, %v50
    %v166 = vpop.permute.xlu0 %165
    %v168 = vperm.slane %v51, 6
    %v169 = vmul.f32 %v162, %v168
    %v170 = vmul.f32 %v166, %v168
    %v171 = vadd.f32 %v158, %v169
    %v172 = vadd.f32 %v159, %v170
    %v173 = vld [vmem:[%s2] sm:$0xff]
    %v174 = vld [vmem:[%s2 + $0x8] sm:$0xff]
    %v175 = vld [vmem:[#allocation2] sm:$0x3]
    %vm176 = vcmp.eq.s32.totalorder %v173, 0
    %vm177 = vcmp.eq.s32.totalorder %v174, 0
    %v178 = vsel %vm176, 1, 0
    %v179 = vsel %vm177, 1, 0
    %180 = vset.pattern.permute.xlu0 0
    %181 = vperm.xlu0 %180, %v178
    %v182 = vpop.permute.xlu0 %181
    %183 = vset.pattern.permute.xlu0 0
    %184 = vperm.xlu0 %183, %v179
    %v185 = vpop.permute.xlu0 %184
    %vm186 = vcmp.eq.s32.totalorder %v182, 1
    %vm187 = vcmp.eq.s32.totalorder %v185, 1
    %v188 = vperm.slane %v175, 0
    %v189 = vsel %vm186, %v188, 0.0
    %v190 = vsel %vm187, %v188, 0.0
    %vm191 = vcmp.eq.s32.totalorder %v173, 1
    %vm192 = vcmp.eq.s32.totalorder %v174, 1
    %v193 = vsel %vm191, 1, 0
    %v194 = vsel %vm192, 1, 0
    %195 = vset.pattern.permute.xlu0 0
    %196 = vperm.xlu0 %195, %v193
    %v197 = vpop.permute.xlu0 %196
    %198 = vset.pattern.permute.xlu0 0
    %199 = vperm.xlu0 %198, %v194
    %v200 = vpop.permute.xlu0 %199
    %vm201 = vcmp.eq.s32.totalorder %v197, 1
    %vm202 = vcmp.eq.s32.totalorder %v200, 1
    %v203 = vperm.slane %v175, 1
    %v204 = vsel %vm201, %v203, %v189
    %v205 = vsel %vm202, %v203, %v190
    %v206 = vadd.f32 %v171, %v204
    %v207 = vadd.f32 %v172, %v205
    %v208 = vld [vmem:[%s6] sm:$0x1]
    %v209 = vperm.slane %v208, 0
    %v210 = vadd.f32 %v206, %v209
    %v211 = vadd.f32 %v207, %v209
    %v212 = vlaneseq
    %v213 = vand.u32 %v212, 127
    %vm214 = vcmp.lt.s32.totalorder %v213, 32
    %v215 = vsel %vm214, 1, 0
    %vm216 = vcmp.eq.s32.totalorder %v215, 1
    %v217 = vsel %vm216, %v210, 0.0
    %v218 = vsel %vm216, %v211, 0.0
    %219 = vadd.xlane.f32.xlu0 %v217
    %v220 = vpop.xlane.xlu0 %219
    %221 = vadd.xlane.f32.xlu0 %v218
    %v222 = vpop.xlane.xlu0 %221
    %v223 = vmul.f32 %v220, 0.03125
    %v224 = vmul.f32 %v222, 0.03125
    %v225 = vsub.f32 %v217, %v223
    %v226 = vsub.f32 %v218, %v224
    %v227 = vsel %vm216, %v225, 0.0
    %v228 = vsel %vm216, %v226, 0.0
    %v229 = vmul.f32 %v227, %v227
    %v230 = vmul.f32 %v228, %v228
    %231 = vadd.xlane.f32.xlu0 %v229
    %v232 = vpop.xlane.xlu0 %231
    %233 = vadd.xlane.f32.xlu0 %v230
    %v234 = vpop.xlane.xlu0 %233
    %v235 = vmul.f32 %v232, 0.03125
    %v236 = vmul.f32 %v234, 0.03125
    %v237 = vadd.f32 %v235, 1e-12
    %v238 = vadd.f32 %v236, 1e-12
    %v239 = vrsqrt.pop %v237
    %v240 = vmul.f32 %v239, %v237
    %v241 = vmul.f32 %v240, %v239
    %v242 = vmul.f32 0.5, %v241
    %v243 = vsub.f32 1.5, %v242
    %v244 = vmul.f32 %v239, %v243
    %vm245 = vweird.f32 %v237
    %vm246 = vweird.f32 %v239
    %vm247 = vmor %vm245, %vm246
    %v248 = vsel %vm247, %v239, %v244
    %v249 = vrsqrt.pop %v238
    %v250 = vmul.f32 %v249, %v238
    %v251 = vmul.f32 %v250, %v249
    %v252 = vmul.f32 0.5, %v251
    %v253 = vsub.f32 1.5, %v252
    %v254 = vmul.f32 %v249, %v253
    %vm255 = vweird.f32 %v238
    %vm256 = vweird.f32 %v249
    %vm257 = vmor %vm255, %vm256
    %v258 = vsel %vm257, %v249, %v254
    %v259 = vmul.f32 %v227, %v248
    %v260 = vmul.f32 %v228, %v258
    %v261 = vld [vmem:[%s6 + $0x1] sm:$0x1]
    %v262 = vperm.slane %v261, 0
    %v263 = vmul.f32 %v259, %v262
    %v264 = vmul.f32 %v260, %v262
    %v265 = vld [vmem:[%s6 + $0x2] sm:$0x1]
    %v266 = vperm.slane %v265, 0
    %v267 = vadd.f32 %v263, %v266
    %v268 = vadd.f32 %v264, %v266
    %269 = vst [vmem:[#allocation5] sm:$0xff] %v267
    %270 = vst [vmem:[#allocation5 + $0x8] sm:$0xff] %v268
    // Predicated region
    $region34: #{tpu_custom_call.1} parent=1 // pred_check
      _
    $region35: #{tpu_custom_call.1} parent=1 // pred_check_branch
      %272 = sbr.rel (0) target = $region37
    $region36: #{tpu_custom_call.1} parent=1 // pred_region
      %274 = vsyncadd [#allocation4], 0
      %s275 = sshll.u32 [#allocation5], 4
      %s276 = int_to_ptr.vmem [resolvable:$true] %s275
      %s277 = sshll.u32 %s7, 4
      %s278 = int_to_ptr.hbm [resolvable:$true] %s277
      %283 = dma.vmem_to_hbm [thread:$0]  %s276, 256, %s278, [#allocation4], 128, 128, 8
    $region37: #{tpu_custom_call.1} parent=1 // pred_fallthru
      _
    // Predicated region
    $region38: #{tpu_custom_call.1} parent=1 // pred_check
      _
    $region39: #{tpu_custom_call.1} parent=1 // pred_check_branch
      %285 = sbr.rel (0) target = $region41
    $region40: #{tpu_custom_call.1} parent=1 // pred_region
      %287 = dma.done [#allocation4], 256
    $region41: #{tpu_custom_call.1} parent=1 // pred_fallthru
      _
    %288 = vsyncpa [#allocation3], 1
    %289 = vsyncpa [#allocation4], 1

</llo_original>
